<compile_context>
chip_gen: v7x
topology: tpu7x:2x2x1
jax: 0.10.0
libtpu: 0.0.40
codegen_flags: <defaults>
</compile_context>

<pallas_src>
import jax
import jax.numpy as jnp
from jax.experimental import pallas as pl
from jax.experimental.pallas import tpu as pltpu

LANE = 128  # one lane-dense vreg row holds up to 128 tasks


def _uwl_kernel(x_ref, out_ref):
    """x_ref: (2, LANE) f32 in VMEM.  Row 0 = losses, row 1 = log_vars.

    Padded lanes are zero-filled in the wrapper, so exp(-0)*0 + 0 == 0 and they
    contribute nothing to the sum -- no in-kernel mask/iota needed (the
    zero-pad invariant in the wrapper is load-bearing).
    """
    losses = x_ref[0:1, :]      # (1, LANE) f32
    log_vars = x_ref[1:2, :]    # (1, LANE) f32
    # sum_i exp(-log_var_i) * loss_i + log_var_i
    out_ref[0, 0] = jnp.sum(jnp.exp(-log_vars) * losses + log_vars)
    # TODO(synk): the per-task `print(f'{reg}:{log_var}')` debug logging has no
    # clean in-kernel equivalent (would need pl.debug_print + log-recorder flags).


def uncertainty_weighted_loss(losses, log_vars):
    """losses, log_vars: (num_tasks,) arrays. Returns scalar f32 total loss.

    Note: this is a ~12-flop reduction, so in production the right move is to
    fuse this math into whatever op produces the per-task losses (or leave it
    as plain jnp for XLA to fuse); the pallas_call boundary is the dominant
    cost.  Kept here as the most minimal form: gridless, single packed input,
    scalar SMEM output.
    """
    num_tasks = losses.shape[0]
    assert log_vars.shape[0] == num_tasks
    assert num_tasks <= LANE, f"num_tasks={num_tasks} exceeds lane width {LANE}"

    # Pack both vectors into a single (2, LANE) f32 tile with one stack + one
    # pad HLO (instead of two dynamic-update-slice scatters and two inputs).
    x = jnp.pad(
        jnp.stack([losses, log_vars]).astype(jnp.float32),
        ((0, 0), (0, LANE - num_tasks)),
    )

    out = pl.pallas_call(
        _uwl_kernel,
        out_shape=jax.ShapeDtypeStruct((1, 1), jnp.float32),
        in_specs=[pl.BlockSpec(memory_space=pltpu.MemorySpace.VMEM)],
        out_specs=pl.BlockSpec(memory_space=pltpu.MemorySpace.SMEM),
    )(x)
    return out[0, 0]


if __name__ == "__main__":
    # Module setup: reg_list with 4 regularization/task names,
    # log_vars initialized to zeros (as in nn.Parameter(torch.zeros(len(reg_list)))).
    reg_list = ["l1", "ssim", "grad", "normal"]
    num_tasks = len(reg_list)
    log_vars = jnp.zeros((num_tasks,), jnp.float32)

    # Synthetic per-task scalar losses.
    key = jax.random.PRNGKey(0)
    losses = jax.random.uniform(key, (num_tasks,), jnp.float32, 0.1, 2.0)

    total = uncertainty_weighted_loss(losses, log_vars)
    total = jax.block_until_ready(total)

    # Reference check in plain JAX (same math as the PyTorch forward).
    ref = jnp.sum(jnp.exp(-log_vars) * losses + log_vars)
    assert jnp.allclose(total, ref, rtol=1e-6, atol=1e-6), (total, ref)

    print("KERNEL_OK")
</pallas_src>

<mosaic_0001>
module attributes {stable_mosaic.version = 11 : i64} {
  func.func @_uwl_kernel(%arg0: memref<2x128xf32, #tpu.memory_space<vmem>>, %arg1: memref<1x1xf32, #tpu.memory_space<smem>>) attributes {dimension_semantics = [], scalar_prefetch = 0 : i64, scratch_operands = 0 : i64, tpu.core_type = #tpu.core_type<tc>} {
    %c0 = arith.constant 0 : index
    %c0_0 = arith.constant 0 : index
    %0 = vector.load %arg0[%c0, %c0_0] : memref<2x128xf32, #tpu.memory_space<vmem>>, vector<1x128xf32>
    %c1 = arith.constant 1 : index
    %c0_1 = arith.constant 0 : index
    %1 = vector.load %arg0[%c1, %c0_1] : memref<2x128xf32, #tpu.memory_space<vmem>>, vector<1x128xf32>
    %cst = arith.constant 0.000000e+00 : f32
    %2 = vector.broadcast %cst : f32 to vector<1x128xf32>
    %3 = arith.subf %2, %1 : vector<1x128xf32>
    %4 = math.exp %3 : vector<1x128xf32>
    %5 = arith.mulf %4, %0 : vector<1x128xf32>
    %6 = arith.addf %5, %1 : vector<1x128xf32>
    %7 = vector.shape_cast %6 : vector<1x128xf32> to vector<1x1x128xf32>
    %cst_2 = arith.constant dense<0.000000e+00> : vector<1xf32>
    %8 = vector.multi_reduction <add>, %7, %cst_2 [1, 2] : vector<1x1x128xf32> to vector<1xf32>
    %9 = vector.shape_cast %8 : vector<1xf32> to vector<1x1x1xf32>
    %10 = vector.extract %9[0, 0, 0] : f32 from vector<1x1x1xf32>
    %c0_3 = arith.constant 0 : index
    %c0_4 = arith.constant 0 : index
    %11 = memref.load %arg1[%c0_3, %c0_4] : memref<1x1xf32, #tpu.memory_space<smem>>
    memref.store %10, %arg1[%c0_3, %c0_4] : memref<1x1xf32, #tpu.memory_space<smem>>
    return
  }
}

</mosaic_0001>

<llo_original>
// kernel: tpu_custom_call.1
$region0: #{tpu_custom_call.1}
  #allocation0 [shape = 'u32[]', space=smem, size = 0x4, offset = 0x4, fixed_abs, tag = 'smem constant byte address 0x4 - core index']
  #allocation1 [shape = 'u32[144,128]{1,0:T(1,128)}', space=vmem, size = 0x12000, scoped, tag = 'internal scratch']
  %s0 = inlined_call_operand.hbm [shape: f32[2,128], index: 0, kind: input, shape index: {}]
  %s1 = inlined_call_operand.hbm [shape: f32[1,1], index: 1, kind: output, shape index: {}]
  %s2 = sld [smem:[#allocation0]]
  $region18: #{tpu_custom_call.1} parent=0
    _
  %s4 = ssub.s32 1, %s2
  %s5 = scalar_select 0, %s4, %s2
  $region1: #{tpu_custom_call.1} parent=0
    #allocation2 [shape = 'u8[1024]{0}', space=vmem, size = 0x400, scoped, tag = 'input window, operand 0, single buffered']
    #allocation3 [shape = 's32[1]{0}', space=sflag, size = 0x4, scoped, tag = 'scoped memory for tpu_custom_call.1']
    #allocation4 [shape = 's32[1]{0}', space=sflag, size = 0x4, scoped, tag = 'scoped memory for tpu_custom_call.1']
    #allocation5 [shape = 'u8[512]{0}', space=smem, size = 0x200, scoped, tag = 'output window, operand 0, single buffered']
    %6 = vsyncpa [#allocation3], 0
    %7 = vsyncpa [#allocation4], 0
    // Predicated region
    $region2: #{tpu_custom_call.1} parent=1 // pred_check
      _
    $region3: #{tpu_custom_call.1} parent=1 // pred_check_branch
      %9 = sbr.rel (0) target = $region5
    $region4: #{tpu_custom_call.1} parent=1 // pred_region
      %s11 = ssub.s32 32, 32
      %12 = vsyncadd [#allocation3], %s11
      %s14 = sshll.u32 [#allocation2], 4
      %s15 = int_to_ptr.vmem [resolvable:$true] %s14
      %17 = dma.hbm_to_vmem [thread:$0]  %s0, 32, %s15, [#allocation3]
    $region5: #{tpu_custom_call.1} parent=1 // pred_fallthru
      _
    // Predicated region
    $region6: #{tpu_custom_call.1} parent=1 // pred_check
      _
    $region7: #{tpu_custom_call.1} parent=1 // pred_check_branch
      %19 = sbr.rel (0) target = $region9
    $region8: #{tpu_custom_call.1} parent=1 // pred_region
      %20 = dma.done [#allocation3], 32
    $region9: #{tpu_custom_call.1} parent=1 // pred_fallthru
      _
    %v21 = vld [vmem:[#allocation2] sm:$0x1]
    %v22 = vld [vmem:[#allocation2 + $0x1] sm:$0x1]
    %v23 = vsub.f32 0.0, %v22
    %v24 = vmul.f32 %v23, 1.442695
    %v25 = vpow.pop %v24
    %v26 = vmul.f32 %v25, %v21
    %v27 = vadd.f32 %v26, %v22
    %vm28 = vcmask 1040384
    %v29 = vsel %vm28, %v27, 0.0
    %30 = vadd.xlane.f32.xlu0 %v29
    %v31 = vpop.xlane.xlu0 %30
    %v32 = vrot.slane %v31, 4
    %v33 = vadd.f32 %v31, %v32
    %v34 = vrot.slane %v33, 2
    %v35 = vadd.f32 %v33, %v34
    %v36 = vrot.slane %v35, 1
    %v37 = vadd.f32 %v35, %v36
    %s38 = vtos %v37
    %s39 = scalar_lea.smem [#allocation5], 0
    %40 = sst [smem:[%s39]] %s38
    // Predicated region
    $region10: #{tpu_custom_call.1} parent=1 // pred_check
      _
    $region11: #{tpu_custom_call.1} parent=1 // pred_check_branch
      %42 = sbr.rel (0) target = $region13
    $region12: #{tpu_custom_call.1} parent=1 // pred_region
      %s44 = ssub.s32 16, 16
      %45 = vsyncadd [#allocation4], %s44
      %48 = dma.smem_to_hbm [#allocation5], 16, %s1, [#allocation4]
    $region13: #{tpu_custom_call.1} parent=1 // pred_fallthru
      _
    // Predicated region
    $region14: #{tpu_custom_call.1} parent=1 // pred_check
      _
    $region15: #{tpu_custom_call.1} parent=1 // pred_check_branch
      %50 = sbr.rel (0) target = $region17
    $region16: #{tpu_custom_call.1} parent=1 // pred_region
      %51 = dma.done [#allocation4], 16
    $region17: #{tpu_custom_call.1} parent=1 // pred_fallthru
      _
    %52 = sfence
    %53 = vsyncpa [#allocation3], 1
    %54 = vsyncpa [#allocation4], 1

</llo_original>
